<compile_context>
chip_gen: v5e
topology: v5e:2x2
jax: 0.10.0
libtpu: 0.0.40
codegen_flags: <defaults>
</compile_context>

<pallas_src>
import functools

import jax
import jax.numpy as jnp
from jax import lax
from jax.experimental import pallas as pl
from jax.experimental.pallas import tpu as pltpu


def _round_up(x, m):
    return ((x + m - 1) // m) * m


# --------------------------------------------------------------------------
# Kernels
# --------------------------------------------------------------------------
def _decoder_kernel_single_k(x_ref, w_ref, b_ref, o_ref):
    """Single K step: grid = (M/tm, N/tn). o = x @ W^T + b in one shot."""
    acc = jnp.dot(x_ref[...], w_ref[...], preferred_element_type=jnp.float32)
    o_ref[...] = (acc + b_ref[...].astype(jnp.float32)).astype(o_ref.dtype)


def _decoder_kernel_accum_out(x_ref, w_ref, b_ref, o_ref):
    """Multi K step, f32 output: accumulate directly into the resident
    output tile (its index map ignores k), no scratch needed."""
    k = pl.program_id(2)

    @pl.when(k == 0)
    def _():
        o_ref[...] = jnp.broadcast_to(b_ref[...].astype(o_ref.dtype), o_ref.shape)

    o_ref[...] += jnp.dot(x_ref[...], w_ref[...], preferred_element_type=jnp.float32)


def _decoder_kernel_scratch(x_ref, w_ref, b_ref, o_ref, acc_ref):
    """Multi K step, narrow (non-f32) output: f32 scratch accumulator,
    bias folded into the k==0 init, epilogue is just cast + store."""
    k = pl.program_id(2)

    @pl.when(k == 0)
    def _():
        acc_ref[...] = jnp.broadcast_to(
            b_ref[...].astype(jnp.float32), acc_ref.shape
        )

    acc_ref[...] += jnp.dot(x_ref[...], w_ref[...], preferred_element_type=jnp.float32)

    @pl.when(k == pl.num_programs(2) - 1)
    def _():
        o_ref[...] = acc_ref[...].astype(o_ref.dtype)


# --------------------------------------------------------------------------
# One-time parameter preparation (layout plumbing at init, not per call)
# --------------------------------------------------------------------------
def prepare_decoder_params(w_d, b_d, *, tn=512, tk=512, compute_dtype=None):
    """Pre-transpose W_d to (K, N), pre-pad weight & bias to tile multiples.

    w_d: (n_activations, n_features)  -- PyTorch nn.Linear weight layout
    b_d: (n_activations,)
    """
    N, K = w_d.shape
    assert b_d.shape == (N,), "bias shape mismatch"

    if compute_dtype is not None:
        # e.g. bf16 weights: halves the dominant N*K HBM stream; accumulation
        # inside the kernel stays f32.
        w_d = w_d.astype(compute_dtype)

    # Tile sizes respecting TPU lane/sublane geometry (multiples of 128 on the
    # contracted / output-lane dims), no larger than the padded array dims.
    tn = min(tn, _round_up(N, 128))
    tk = min(tk, _round_up(K, 128))
    Np = _round_up(N, tn)
    Kp = _round_up(K, tk)

    # Keep >= 2 blocks along the parallel N axis when possible so v7x's two
    # TensorCores both get work even if M collapses to a single block.
    if Np // tn == 1 and tn >= 256:
        tn = _round_up(tn // 2, 128)
        Np = _round_up(N, tn)

    # One-time transpose (N,K) -> (K,N) + zero pad.  Zero-padded K rows
    # contribute nothing; padded N columns are sliced off after the call.
    w_t = jnp.transpose(w_d)
    if (Kp, Np) != (K, N):
        w_t = jnp.pad(w_t, ((0, Kp - K), (0, Np - N)))
    b_p = jnp.pad(b_d, (0, Np - N)) if Np != N else b_d
    b_2d = b_p.reshape(1, Np)

    return {
        "w_t": w_t, "b_2d": b_2d,
        "N": N, "K": K, "Np": Np, "Kp": Kp, "tn": tn, "tk": tk,
    }


def _vmem_budget_bytes():
    """~3/4 of physical VMEM: ~48 MiB on v7x (64 MiB), ~96 MiB on v5e/v6e."""
    cap = None
    try:
        info = pltpu.get_tpu_info()
        cap = getattr(info, "vmem_capacity_bytes", None)
    except Exception:
        cap = None
    if not cap:
        cap = 64 * 1024 * 1024  # conservative (v7x) fallback
    return int(cap * 3 // 4)


# --------------------------------------------------------------------------
# Forward
# --------------------------------------------------------------------------
def decoder_forward(x, params, *, tm=1024):
    """forward(x) = x @ W_d.T + b_d, using pre-prepared (transposed/padded)
    decoder parameters from prepare_decoder_params."""
    B, K = x.shape
    assert K == params["K"], "feature dim mismatch"
    out_dtype = x.dtype

    w_t, b_2d = params["w_t"], params["b_2d"]
    N, Np, Kp = params["N"], params["Np"], params["Kp"]
    tn, tk = params["tn"], params["tk"]

    if x.dtype != w_t.dtype:
        x = x.astype(w_t.dtype)

    in_itemsize = jnp.dtype(x.dtype).itemsize
    out_itemsize = jnp.dtype(out_dtype).itemsize

    # Round tm to the dtype's sublane pack (8 f32 / 16 bf16 / 32 int8-fp8)
    # so stores stay sublane-dense.
    pack = max(8, 32 // in_itemsize)
    tm = max(pack, min(tm, _round_up(B, pack)))

    k_steps = Kp // tk
    multi_k = k_steps > 1
    use_scratch = multi_k and out_dtype != jnp.float32

    budget = _vmem_budget_bytes()

    def _vmem_needed(tm_):
        need = (
            2 * (tm_ * tk + tk * tn + tn) * in_itemsize  # dbl-buffered inputs
            + 2 * tm_ * tn * out_itemsize                # dbl-buffered output
        )
        if use_scratch:
            need += tm_ * tn * 4                         # f32 accumulator
        return need

    # Shrink tm if the double-buffered tile set would not fit the budget
    # (keeps v7x's 64 MiB safe while letting v5e/v6e use big tiles).
    while _vmem_needed(tm) > budget and tm > pack:
        tm = max(pack, _round_up(tm // 2, pack))

    Mp = _round_up(B, tm)
    if (Mp, Kp) != (B, K):
        x = jnp.pad(x, ((0, Mp - B), (0, Kp - K)))

    vmem_limit = int(min(budget, max(_vmem_needed(tm) * 2, 16 * 1024 * 1024)))

    cost = pl.CostEstimate(
        flops=2 * Mp * Np * Kp,
        transcendentals=0,
        bytes_accessed=(Mp * Kp + Np * Kp + Np) * in_itemsize
        + Mp * Np * out_itemsize,
    )

    if not multi_k:
        # Fast path: single K step, no reduction axis, no scratch.
        grid = (Mp // tm, Np // tn)
        out = pl.pallas_call(
            _decoder_kernel_single_k,
            out_shape=jax.ShapeDtypeStruct((Mp, Np), out_dtype),
            grid_spec=pltpu.PrefetchScalarGridSpec(
                num_scalar_prefetch=0,
                grid=grid,
                in_specs=[
                    pl.BlockSpec((tm, Kp), lambda i, j: (i, 0)),   # x tile
                    pl.BlockSpec((Kp, tn), lambda i, j: (0, j)),   # W^T tile
                    pl.BlockSpec((1, tn), lambda i, j: (0, j)),    # bias tile
                ],
                out_specs=pl.BlockSpec((tm, tn), lambda i, j: (i, j)),
            ),
            compiler_params=pltpu.CompilerParams(
                dimension_semantics=("parallel", "parallel"),
                vmem_limit_bytes=vmem_limit,
            ),
            cost_estimate=cost,
        )(x, w_t, b_2d)
    else:
        grid = (Mp // tm, Np // tn, k_steps)
        kernel = _decoder_kernel_scratch if use_scratch else _decoder_kernel_accum_out
        scratch = [pltpu.VMEM((tm, tn), jnp.float32)] if use_scratch else []
        # NOTE: DMA depth left at default Buffered(2); raise only if a bundle
        # dump shows exposed DMA after tile growth (and VMEM allows).
        out = pl.pallas_call(
            kernel,
            out_shape=jax.ShapeDtypeStruct((Mp, Np), out_dtype),
            grid_spec=pltpu.PrefetchScalarGridSpec(
                num_scalar_prefetch=0,
                grid=grid,
                in_specs=[
                    pl.BlockSpec((tm, tk), lambda i, j, k: (i, k)),  # x tile
                    pl.BlockSpec((tk, tn), lambda i, j, k: (k, j)),  # W^T tile
                    pl.BlockSpec((1, tn), lambda i, j, k: (0, j)),   # bias tile
                ],
                out_specs=pl.BlockSpec((tm, tn), lambda i, j, k: (i, j)),
                scratch_shapes=scratch,
            ),
            compiler_params=pltpu.CompilerParams(
                dimension_semantics=("parallel", "parallel", "arbitrary"),
                vmem_limit_bytes=vmem_limit,
            ),
            cost_estimate=cost,
        )(x, w_t, b_2d)

    if (Mp, Np) != (B, N):
        out = out[:B, :N]
    return out


# --------------------------------------------------------------------------
# Self-test
# --------------------------------------------------------------------------
if __name__ == "__main__":
    key = jax.random.PRNGKey(0)
    kx, kw, kb = jax.random.split(key, 3)

    # 1) Small, non-tile-aligned shapes (exercises padding + single-K fast path
    #    + the ">=2 N blocks" split).
    B, n_features, n_activations = 48, 160, 200
    x = jax.random.normal(kx, (B, n_features), dtype=jnp.float32)
    w_d = jax.random.normal(kw, (n_activations, n_features), dtype=jnp.float32) * 0.05
    b_d = jax.random.normal(kb, (n_activations,), dtype=jnp.float32) * 0.1

    params = prepare_decoder_params(w_d, b_d)          # f32, one-time layout work
    out = jax.block_until_ready(decoder_forward(x, params))
    ref = jnp.dot(x, w_d.T, precision=lax.Precision.HIGHEST) + b_d
    assert out.shape == (B, n_activations)
    assert jnp.allclose(out, ref, atol=1e-3, rtol=1e-3), "mismatch (fast path)"

    # 2) Multi-step K reduction with f32 output (accumulate-into-output path).
    B2, K2, N2 = 16, 256, 256
    x2 = jax.random.normal(kx, (B2, K2), dtype=jnp.float32)
    w2 = jax.random.normal(kw, (N2, K2), dtype=jnp.float32) * 0.05
    bb2 = jax.random.normal(kb, (N2,), dtype=jnp.float32) * 0.1
    params2 = prepare_decoder_params(w2, bb2, tn=128, tk=128)
    out2 = jax.block_until_ready(decoder_forward(x2, params2, tm=8))
    ref2 = jnp.dot(x2, w2.T, precision=lax.Precision.HIGHEST) + bb2
    assert out2.shape == (B2, N2)
    assert jnp.allclose(out2, ref2, atol=1e-3, rtol=1e-3), "mismatch (multi-K f32)"

    # 3) bf16 compute dtype + bf16 output (scratch-accumulator path).
    x3 = x2.astype(jnp.bfloat16)
    params3 = prepare_decoder_params(w2, bb2, tn=128, tk=128,
                                     compute_dtype=jnp.bfloat16)
    out3 = jax.block_until_ready(decoder_forward(x3, params3, tm=16))
    ref3 = (
        jnp.dot(x3.astype(jnp.float32),
                w2.astype(jnp.bfloat16).astype(jnp.float32).T,
                precision=lax.Precision.HIGHEST) + bb2
    ).astype(jnp.bfloat16)
    assert out3.shape == (B2, N2)
    assert jnp.allclose(out3.astype(jnp.float32), ref3.astype(jnp.float32),
                        atol=3e-2, rtol=3e-2), "mismatch (bf16 path)"

    print("KERNEL_OK")
</pallas_src>

<mosaic_0001>
module attributes {stable_mosaic.version = 11 : i64} {
  func.func @_decoder_kernel_single_k(%arg0: i32, %arg1: i32, %arg2: memref<48x256xf32, #tpu.memory_space<vmem>>, %arg3: memref<256x128xf32, #tpu.memory_space<vmem>>, %arg4: memref<1x128xf32, #tpu.memory_space<vmem>>, %arg5: memref<48x128xf32, #tpu.memory_space<vmem>>) attributes {dimension_semantics = [#tpu.dimension_semantics<parallel>, #tpu.dimension_semantics<parallel>], iteration_bounds = array<i64: 1, 2>, scalar_prefetch = 0 : i64, scratch_operands = 0 : i64, tpu.core_type = #tpu.core_type<tc>, window_params = [{transform_indices = @transform_0, window_bounds = array<i64: 48, 256>}, {transform_indices = @transform_1, window_bounds = array<i64: 256, 128>}, {transform_indices = @transform_2, window_bounds = array<i64: 1, 128>}, {transform_indices = @transform_3, window_bounds = array<i64: 48, 128>}]} {
    %c0 = arith.constant 0 : index
    %c0_0 = arith.constant 0 : index
    %0 = vector.load %arg2[%c0, %c0_0] : memref<48x256xf32, #tpu.memory_space<vmem>>, vector<48x256xf32>
    %c0_1 = arith.constant 0 : index
    %c0_2 = arith.constant 0 : index
    %1 = vector.load %arg3[%c0_1, %c0_2] : memref<256x128xf32, #tpu.memory_space<vmem>>, vector<256x128xf32>
    %cst = arith.constant dense<0.000000e+00> : vector<48x128xf32>
    %2 = tpu.matmul %0, %1, %cst {dimension_numbers = #tpu.dot_dimension_numbers<[1], [0], [0], [1], [0, 0, 1, 1], [], []>} : vector<48x256xf32>, vector<256x128xf32>, vector<48x128xf32> -> vector<48x128xf32>
    %c0_3 = arith.constant 0 : index
    %c0_4 = arith.constant 0 : index
    %3 = vector.load %arg4[%c0_3, %c0_4] : memref<1x128xf32, #tpu.memory_space<vmem>>, vector<1x128xf32>
    %4 = vector.broadcast %3 : vector<1x128xf32> to vector<48x128xf32>
    %5 = arith.addf %2, %4 : vector<48x128xf32>
    %c0_5 = arith.constant 0 : index
    %c0_6 = arith.constant 0 : index
    %6 = vector.load %arg5[%c0_5, %c0_6] : memref<48x128xf32, #tpu.memory_space<vmem>>, vector<48x128xf32>
    tpu.vector_store %arg5[%c0_5, %c0_6], %5 {strides = array<i32>} : memref<48x128xf32, #tpu.memory_space<vmem>>, vector<48x128xf32>,
    return
  }
  func.func @transform_0(%arg0: i32, %arg1: i32) -> (i32, i32) {
    %c0_i32 = arith.constant 0 : i32
    %c0_i32_0 = arith.constant 0 : i32
    return %arg0, %c0_i32 : i32, i32
  }
  func.func @transform_1(%arg0: i32, %arg1: i32) -> (i32, i32) {
    %c0_i32 = arith.constant 0 : i32
    %c0_i32_0 = arith.constant 0 : i32
    return %c0_i32, %arg1 : i32, i32
  }
  func.func @transform_2(%arg0: i32, %arg1: i32) -> (i32, i32) {
    %c0_i32 = arith.constant 0 : i32
    %c0_i32_0 = arith.constant 0 : i32
    return %c0_i32, %arg1 : i32, i32
  }
  func.func @transform_3(%arg0: i32, %arg1: i32) -> (i32, i32) {
    %c0_i32 = arith.constant 0 : i32
    return %arg0, %arg1 : i32, i32
  }
}

</mosaic_0001>

<llo_original>
// kernel: tpu_custom_call.1
$region0: #{tpu_custom_call.1}
  #allocation0 [shape = 'u32[]', space=smem, size = 0x4, offset = 0x4, fixed_abs, tag = 'smem constant byte address 0x4 - core index']
  #allocation1 [shape = 'u32[72,128]{1,0:T(1,128)}', space=vmem, size = 0x9000, scoped, tag = 'internal scratch']
  %s0 = inlined_call_operand.hbm [shape: f32[48,256], index: 0, kind: input, shape index: {}]
  %s1 = inlined_call_operand.hbm [shape: f32[256,256], index: 1, kind: input, shape index: {}]
  %s2 = inlined_call_operand.hbm [shape: f32[1,256], index: 2, kind: input, shape index: {}]
  %s3 = inlined_call_operand.hbm [shape: f32[48,256], index: 3, kind: output, shape index: {}]
  %s4 = sld [smem:[#allocation0]]
  $region57: #{tpu_custom_call.1} parent=0
    _
  %s6 = ssub.s32 1, %s4
  %s7 = scalar_select 0, %s6, %s4
  $region1: #{tpu_custom_call.1} parent=0
    #allocation2 [shape = 'u8[49152]{0}', space=vmem, size = 0xc000, scoped, tag = 'input window, operand 0, single buffered']
    #allocation3 [shape = 's32[2]{0}', space=sflag, size = 0x8, scoped, tag = 'scoped memory for tpu_custom_call.1']
    #allocation4 [shape = 's32[2]{0}', space=sflag, size = 0x8, scoped, tag = 'scoped memory for tpu_custom_call.1']
    #allocation5 [shape = 'u8[262144]{0}', space=vmem, size = 0x40000, scoped, tag = 'input window, operand 1']
    #allocation6 [shape = 's32[2]{0}', space=sflag, size = 0x8, scoped, tag = 'scoped memory for tpu_custom_call.1']
    #allocation7 [shape = 'u8[1024]{0}', space=vmem, size = 0x400, scoped, tag = 'input window, operand 2']
    #allocation8 [shape = 'u8[49152]{0}', space=vmem, size = 0xc000, scoped, tag = 'output window, operand 0']
    %8 = vsyncpa [#allocation3], 0
    %9 = vsyncpa [#allocation6], 0
    %s10 = scalar_lea.sflag [#allocation6], 1
    %11 = vsyncpa %s10, 0
    %12 = vsyncpa [#allocation4], 0
    %s13 = scalar_lea.sflag [#allocation4], 1
    %14 = vsyncpa %s13, 0
    loop: start=0, step=1, limit=4
    $region2: #{tpu_custom_call.1} parent=1 // loop_pre_header
      _
    $region3: #{tpu_custom_call.1} parent=1 // loop_header
      %s16 = sphi 0, %s20
      %p17 = scmp.ge.s32.totalorder %s16, 4
      %s23 = sphi 0, %s35
      %s24 = sphi 0, %s31
      %s25 = sphi 0, %s23
      %s26 = sphi 0, %s24
      %s27 = sphi 0, %s25
      %s28 = sphi 0, %s26
      %s38 = sphi 0, %s40
      %s41 = sphi 0, %s38
      %s42 = sphi 0, %s41
      %s58 = sphi 0, %s42
      %s64 = sphi 0, %s66
      %s67 = sphi 0, %s64
      %s68 = sphi 0, %s67
      %s84 = sphi 0, %s68
      %s90 = sphi 0, %s92
      %s93 = sphi 0, %s90
      %s94 = sphi 0, %s93
      %s110 = sphi 0, %s94
      %s118 = sphi 0, %s120
      %s121 = sphi 0, %s118
      %s122 = sphi 0, %s121
      %s138 = sphi 0, %s122
    $region4: #{tpu_custom_call.1} parent=1 // loop_header_branch
      %19 = sbr.rel (%p17) target = $region8
    $region5: #{tpu_custom_call.1} parent=1 // loop_body
      %s21 = ssub.s32 %s16, 1
      %s22 = ssub.s32 %s16, 2
      %s29 = sadd.s32 1, %s24
      %p30 = scmp.ge.s32.totalorder %s29, 2
      %s31 = scalar_select %p30, 0, %s29
      %s32 = sadd.s32 1, %s23
      %s33 = scalar_select %p30, %s32, %s23
      %p34 = scmp.ge.s32.totalorder %s33, 1
      %s35 = scalar_select %p34, 0, %s33
      %s36 = ssub.s32 %s23, %s35
      %p37 = scmp.eq.s32.totalorder %s36, 0
      %s39 = sadd.s32 %s38, 1
      %s40 = scalar_select %p37, %s38, %s39
      %p43 = pneg %p37
      %p44 = scmp.eq.s32.totalorder %s16, 1
      %p45 = por %p43, %p44
      %p46 = scmp.ne.s32.totalorder %s38, %s41
      %p47 = scmp.eq.s32.totalorder %s16, 0
      %p48 = por %p46, %p47
      %p49 = scmp.ne.s32.totalorder %s38, %s41
      %p50 = scmp.eq.s32.totalorder %s21, 1
      %p51 = por %p49, %p50
      %p52 = scmp.ne.s32.totalorder %s41, %s42
      %p53 = scmp.eq.s32.totalorder %s21, 0
      %p54 = por %p52, %p53
      %p55 = scmp.ne.s32.totalorder %s41, %s42
      %p56 = scmp.eq.s32.totalorder %s22, 1
      %p57 = por %p55, %p56
      %p59 = scmp.ne.s32.totalorder %s42, %s58
      %p60 = scmp.eq.s32.totalorder %s22, 0
      %p61 = por %p59, %p60
      %s62 = ssub.s32 %s24, %s31
      %p63 = scmp.eq.s32.totalorder %s62, 0
      %s65 = sadd.s32 %s64, 1
      %s66 = scalar_select %p63, %s64, %s65
      %p69 = pneg %p63
      %p70 = scmp.eq.s32.totalorder %s16, 1
      %p71 = por %p69, %p70
      %p72 = scmp.ne.s32.totalorder %s64, %s67
      %p73 = scmp.eq.s32.totalorder %s16, 0
      %p74 = por %p72, %p73
      %p75 = scmp.ne.s32.totalorder %s64, %s67
      %p76 = scmp.eq.s32.totalorder %s21, 1
      %p77 = por %p75, %p76
      %p78 = scmp.ne.s32.totalorder %s67, %s68
      %p79 = scmp.eq.s32.totalorder %s21, 0
      %p80 = por %p78, %p79
      %p81 = scmp.ne.s32.totalorder %s67, %s68
      %p82 = scmp.eq.s32.totalorder %s22, 1
      %p83 = por %p81, %p82
      %p85 = scmp.ne.s32.totalorder %s68, %s84
      %p86 = scmp.eq.s32.totalorder %s22, 0
      %p87 = por %p85, %p86
      %s88 = ssub.s32 %s24, %s31
      %p89 = scmp.eq.s32.totalorder %s88, 0
      %s91 = sadd.s32 %s90, 1
      %s92 = scalar_select %p89, %s90, %s91
      %p95 = pneg %p89
      %p96 = scmp.eq.s32.totalorder %s16, 1
      %p97 = por %p95, %p96
      %p98 = scmp.ne.s32.totalorder %s90, %s93
      %p99 = scmp.eq.s32.totalorder %s16, 0
      %p100 = por %p98, %p99
      %p101 = scmp.ne.s32.totalorder %s90, %s93
      %p102 = scmp.eq.s32.totalorder %s21, 1
      %p103 = por %p101, %p102
      %p104 = scmp.ne.s32.totalorder %s93, %s94
      %p105 = scmp.eq.s32.totalorder %s21, 0
      %p106 = por %p104, %p105
      %p107 = scmp.ne.s32.totalorder %s93, %s94
      %p108 = scmp.eq.s32.totalorder %s22, 1
      %p109 = por %p107, %p108
      %p111 = scmp.ne.s32.totalorder %s94, %s110
      %p112 = scmp.eq.s32.totalorder %s22, 0
      %p113 = por %p111, %p112
      %s114 = ssub.s32 %s23, %s35
      %s115 = ssub.s32 %s24, %s31
      %s116 = sor.u32 %s114, %s115
      %p117 = scmp.eq.s32.totalorder %s116, 0
      %s119 = sadd.s32 %s118, 1
      %s120 = scalar_select %p117, %s118, %s119
      %p123 = pneg %p117
      %p124 = scmp.eq.s32.totalorder %s16, 1
      %p125 = por %p123, %p124
      %p126 = scmp.ne.s32.totalorder %s118, %s121
      %p127 = scmp.eq.s32.totalorder %s16, 0
      %p128 = por %p126, %p127
      %p129 = scmp.ne.s32.totalorder %s118, %s121
      %p130 = scmp.eq.s32.totalorder %s21, 1
      %p131 = por %p129, %p130
      %p132 = scmp.ne.s32.totalorder %s121, %s122
      %p133 = scmp.eq.s32.totalorder %s21, 0
      %p134 = por %p132, %p133
      %p135 = scmp.ne.s32.totalorder %s121, %s122
      %p136 = scmp.eq.s32.totalorder %s22, 1
      %p137 = por %p135, %p136
      %p139 = scmp.ne.s32.totalorder %s122, %s138
      %p140 = scmp.eq.s32.totalorder %s22, 0
      %p141 = por %p139, %p140
      %p142 = scmp.le.s32.totalorder 1, %s16
      %p143 = scmp.lt.s32.totalorder %s16, 3
      %p144 = pnand %p142, %p143
      %p145 = pneg %p144
      // Predicated region
      $region9: #{tpu_custom_call.1} parent=5 // pred_check
        _
      $region10: #{tpu_custom_call.1} parent=5 // pred_check_branch
        %147 = sbr.rel (%p144) target = $region12
      $region11: #{tpu_custom_call.1} parent=5 // pred_region
        %s148 = ssub.s32 %s16, 1
        // Predicated region
        $region13: #{tpu_custom_call.1} parent=11 // pred_check
          %p149 = pneg %p54
        $region14: #{tpu_custom_call.1} parent=11 // pred_check_branch
          %151 = sbr.rel (%p149) target = $region16
        $region15: #{tpu_custom_call.1} parent=11 // pred_region
          %s152 = smul.u32 6, %s25
          %154 = vsyncadd [#allocation3], 0
          %s155 = smul.addr %s152, 2
          %s156 = smul.addr %s155, 8
          %s157 = scalar_lea.hbm %s0, %s156
          %s158 = sshll.u32 %s157, 4
          %s159 = int_to_ptr.hbm [resolvable:$true] %s158
          %s160 = sshll.u32 [#allocation2], 4
          %s161 = int_to_ptr.vmem [resolvable:$true] %s160
          %166 = dma.hbm_to_vmem [thread:$0]  %s159, 1536, %s161, [#allocation3], 256, 256, 16
        $region16: #{tpu_custom_call.1} parent=11 // pred_fallthru
          _
      $region12: #{tpu_custom_call.1} parent=5 // pred_fallthru
        _
      %p167 = scmp.lt.s32.totalorder %s16, 2
      // Predicated region
      $region17: #{tpu_custom_call.1} parent=5 // pred_check
        %p168 = pneg %p167
      $region18: #{tpu_custom_call.1} parent=5 // pred_check_branch
        %170 = sbr.rel (%p168) target = $region20
      $region19: #{tpu_custom_call.1} parent=5 // pred_region
        // Predicated region
        $region21: #{tpu_custom_call.1} parent=19 // pred_check
          %p171 = pneg %p74
        $region22: #{tpu_custom_call.1} parent=19 // pred_check_branch
          %173 = sbr.rel (%p171) target = $region24
        $region23: #{tpu_custom_call.1} parent=19 // pred_region
          %s174 = sand.u32 %s16, 1
          %s175 = scalar_lea.sflag [#allocation6], %s174
          %s176 = sand.u32 %s64, 1
          %s177 = smul.addr %s176, 256
          %s178 = scalar_lea.vmem [#allocation5], %s177
          %180 = vsyncadd %s175, 0
          %s181 = smul.addr %s24, 8
          %s182 = scalar_lea.hbm %s1, %s181
          %s183 = sshll.u32 %s182, 4
          %s184 = int_to_ptr.hbm [resolvable:$true] %s183
          %s185 = sshll.u32 %s178, 4
          %s186 = int_to_ptr.vmem [resolvable:$true] %s185
          %191 = dma.hbm_to_vmem [thread:$0]  %s184, 4096, %s186, %s175, 256, 128, 8
        $region24: #{tpu_custom_call.1} parent=19 // pred_fallthru
          _
        // Predicated region
        $region25: #{tpu_custom_call.1} parent=19 // pred_check
          %p192 = pneg %p100
        $region26: #{tpu_custom_call.1} parent=19 // pred_check_branch
          %194 = sbr.rel (%p192) target = $region28
        $region27: #{tpu_custom_call.1} parent=19 // pred_region
          %s195 = sand.u32 %s16, 1
          %s196 = scalar_lea.sflag [#allocation6], %s195
          %s197 = sand.u32 %s90, 1
          %s198 = scalar_lea.vmem [#allocation7], %s197
          %200 = vsyncadd %s196, 0
          %s201 = scalar_lea.hbm %s2, %s24
          %s203 = sshll.u32 %s201, 4
          %s204 = int_to_ptr.hbm [resolvable:$true] %s203
          %s205 = sshll.u32 %s198, 4
          %s206 = int_to_ptr.vmem [resolvable:$true] %s205
          %208 = dma.hbm_to_vmem [thread:$0]  %s204, 16, %s206, %s196
        $region28: #{tpu_custom_call.1} parent=19 // pred_fallthru
          _
      $region20: #{tpu_custom_call.1} parent=5 // pred_fallthru
        _
      %p209 = scmp.le.s32.totalorder 1, %s16
      %p210 = scmp.lt.s32.totalorder %s16, 3
      %p211 = pnand %p209, %p210
      %p212 = pneg %p211
      // Predicated region
      $region29: #{tpu_custom_call.1} parent=5 // pred_check
        _
      $region30: #{tpu_custom_call.1} parent=5 // pred_check_branch
        %214 = sbr.rel (%p211) target = $region32
      $region31: #{tpu_custom_call.1} parent=5 // pred_region
        %s215 = ssub.s32 %s16, 1
        // Predicated region
        $region33: #{tpu_custom_call.1} parent=31 // pred_check
          %p216 = pneg %p54
        $region34: #{tpu_custom_call.1} parent=31 // pred_check_branch
          %218 = sbr.rel (%p216) target = $region36
        $region35: #{tpu_custom_call.1} parent=31 // pred_region
          %220 = dma.done [#allocation3], 1536
        $region36: #{tpu_custom_call.1} parent=31 // pred_fallthru
          _
        %s221 = sand.u32 %s21, 1
        %s222 = scalar_lea.sflag [#allocation6], %s221
        %s223 = sand.u32 %s67, 1
        %s224 = smul.addr %s223, 256
        %s225 = scalar_lea.vmem [#allocation5], %s224
        // Predicated region
        $region37: #{tpu_custom_call.1} parent=31 // pred_check
          %p226 = pneg %p80
        $region38: #{tpu_custom_call.1} parent=31 // pred_check_branch
          %228 = sbr.rel (%p226) target = $region40
        $region39: #{tpu_custom_call.1} parent=31 // pred_region
          %230 = dma.done %s222, 4096
        $region40: #{tpu_custom_call.1} parent=31 // pred_fallthru
          _
        %s231 = sand.u32 %s21, 1
        %s232 = scalar_lea.sflag [#allocation6], %s231
        %s233 = sand.u32 %s93, 1
        %s234 = scalar_lea.vmem [#allocation7], %s233
        // Predicated region
        $region41: #{tpu_custom_call.1} parent=31 // pred_check
          %p235 = pneg %p106
        $region42: #{tpu_custom_call.1} parent=31 // pred_check_branch
          %237 = sbr.rel (%p235) target = $region44
        $region43: #{tpu_custom_call.1} parent=31 // pred_region
          %239 = dma.done %s232, 16
        $region44: #{tpu_custom_call.1} parent=31 // pred_fallthru
          _
        %p240 = pneg %p54
        %p241 = pneg %p51
        %s242 = sand.u32 %s21, 1
        %s243 = scalar_lea.sflag [#allocation6], %s242
        %s244 = sand.u32 %s67, 1
        %s245 = smul.addr %s244, 256
        %s246 = scalar_lea.vmem [#allocation5], %s245
        %p247 = pneg %p80
        %p248 = pneg %p77
        %s249 = sand.u32 %s21, 1
        %s250 = scalar_lea.sflag [#allocation6], %s249
        %s251 = sand.u32 %s93, 1
        %s252 = scalar_lea.vmem [#allocation7], %s251
        %p253 = pneg %p106
        %p254 = pneg %p103
        %p255 = pneg %p134
        %p256 = pneg %p131
        %s257 = sand.u32 %s121, 1
        %s258 = scalar_lea.sflag [#allocation4], %s257
        %s259 = sand.u32 %s121, 1
        %s260 = smul.addr %s259, 48
        %s261 = scalar_lea.vmem [#allocation8], %s260
        %s262 = smul.u32 6, %s25
        %s263 = smul.u32 6, %s25
        %v264 = vld [vmem:[#allocation2] sm:$0xff]
        %v265 = vld [vmem:[#allocation2 + $0x8] sm:$0xff]
        %v266 = vld [vmem:[#allocation2 + $0x10] sm:$0xff]
        %v267 = vld [vmem:[#allocation2 + $0x18] sm:$0xff]
        %v268 = vld [vmem:[#allocation2 + $0x20] sm:$0xff]
        %v269 = vld [vmem:[#allocation2 + $0x28] sm:$0xff]
        %v270 = vld [vmem:[#allocation2 + $0x30] sm:$0xff]
        %v271 = vld [vmem:[#allocation2 + $0x38] sm:$0xff]
        %v272 = vld [vmem:[#allocation2 + $0x40] sm:$0xff]
        %v273 = vld [vmem:[#allocation2 + $0x48] sm:$0xff]
        %v274 = vld [vmem:[#allocation2 + $0x50] sm:$0xff]
        %v275 = vld [vmem:[#allocation2 + $0x58] sm:$0xff]
        %v276 = vld [vmem:[%s225] sm:$0xff]
        %v277 = vld [vmem:[%s225 + $0x8] sm:$0xff]
        %v278 = vld [vmem:[%s225 + $0x10] sm:$0xff]
        %v279 = vld [vmem:[%s225 + $0x18] sm:$0xff]
        %v280 = vld [vmem:[%s225 + $0x20] sm:$0xff]
        %v281 = vld [vmem:[%s225 + $0x28] sm:$0xff]
        %v282 = vld [vmem:[%s225 + $0x30] sm:$0xff]
        %v283 = vld [vmem:[%s225 + $0x38] sm:$0xff]
        %v284 = vld [vmem:[%s225 + $0x40] sm:$0xff]
        %v285 = vld [vmem:[%s225 + $0x48] sm:$0xff]
        %v286 = vld [vmem:[%s225 + $0x50] sm:$0xff]
        %v287 = vld [vmem:[%s225 + $0x58] sm:$0xff]
        %v288 = vld [vmem:[%s225 + $0x60] sm:$0xff]
        %v289 = vld [vmem:[%s225 + $0x68] sm:$0xff]
        %v290 = vld [vmem:[%s225 + $0x70] sm:$0xff]
        %v291 = vld [vmem:[%s225 + $0x78] sm:$0xff]
        %v292 = vld [vmem:[%s225 + $0x80] sm:$0xff]
        %v293 = vld [vmem:[%s225 + $0x88] sm:$0xff]
        %v294 = vld [vmem:[%s225 + $0x90] sm:$0xff]
        %v295 = vld [vmem:[%s225 + $0x98] sm:$0xff]
        %v296 = vld [vmem:[%s225 + $0xa0] sm:$0xff]
        %v297 = vld [vmem:[%s225 + $0xa8] sm:$0xff]
        %v298 = vld [vmem:[%s225 + $0xb0] sm:$0xff]
        %v299 = vld [vmem:[%s225 + $0xb8] sm:$0xff]
        %v300 = vld [vmem:[%s225 + $0xc0] sm:$0xff]
        %v301 = vld [vmem:[%s225 + $0xc8] sm:$0xff]
        %v302 = vld [vmem:[%s225 + $0xd0] sm:$0xff]
        %v303 = vld [vmem:[%s225 + $0xd8] sm:$0xff]
        %v304 = vld [vmem:[%s225 + $0xe0] sm:$0xff]
        %v305 = vld [vmem:[%s225 + $0xe8] sm:$0xff]
        %v306 = vld [vmem:[%s225 + $0xf0] sm:$0xff]
        %v307 = vld [vmem:[%s225 + $0xf8] sm:$0xff]
        %v308 = vld [vmem:[%s234] sm:$0x1]
        %v310 = vperm.slane %v308, 0
        %312 = vmatpush.msra.mxu0 %v291
        %313 = vmatpush.msra.mxu0 %v290
        %314 = vmatpush.msra.mxu0 %v289
        %315 = vmatpush.msra.mxu0 %v288
        %316 = vmatpush.msra.mxu0 %v287
        %317 = vmatpush.msra.mxu0 %v286
        %318 = vmatpush.msra.mxu0 %v285
        %319 = vmatpush.msra.mxu0 %v284
        %320 = vmatpush.msra.mxu0 %v283
        %321 = vmatpush.msra.mxu0 %v282
        %322 = vmatpush.msra.mxu0 %v281
        %323 = vmatpush.msra.mxu0 %v280
        %324 = vmatpush.msra.mxu0 %v279
        %325 = vmatpush.msra.mxu0 %v278
        %326 = vmatpush.msra.mxu0 %v277
        %327 = vmatpush.msra.mxu0 %v276
        %328 = vmatmul.f32.gmra.mxu0 %v264
        %v329 = vpop.f32.mrf.mxu0
        %v330 = vadd.f32 %v310, %v329
        %331 = vmatmul.f32.gmra.mxu0 %v266
        %v332 = vpop.f32.mrf.mxu0
        %v333 = vadd.f32 %v310, %v332
        %334 = vmatmul.f32.gmra.mxu0 %v268
        %v335 = vpop.f32.mrf.mxu0
        %v336 = vadd.f32 %v310, %v335
        %337 = vmatmul.f32.gmra.mxu0 %v270
        %v338 = vpop.f32.mrf.mxu0
        %v339 = vadd.f32 %v310, %v338
        %340 = vmatmul.f32.gmra.mxu0 %v272
        %v341 = vpop.f32.mrf.mxu0
        %v342 = vadd.f32 %v310, %v341
        %343 = vmatmul.f32.gmra.mxu0 %v274
        %v344 = vpop.f32.mrf.mxu0
        %v345 = vadd.f32 %v310, %v344
        %346 = vdwg.mxu0
        %347 = vmatpush.msra.mxu0 %v307
        %348 = vmatpush.msra.mxu0 %v306
        %349 = vmatpush.msra.mxu0 %v305
        %350 = vmatpush.msra.mxu0 %v304
        %351 = vmatpush.msra.mxu0 %v303
        %352 = vmatpush.msra.mxu0 %v302
        %353 = vmatpush.msra.mxu0 %v301
        %354 = vmatpush.msra.mxu0 %v300
        %355 = vmatpush.msra.mxu0 %v299
        %356 = vmatpush.msra.mxu0 %v298
        %357 = vmatpush.msra.mxu0 %v297
        %358 = vmatpush.msra.mxu0 %v296
        %359 = vmatpush.msra.mxu0 %v295
        %360 = vmatpush.msra.mxu0 %v294
        %361 = vmatpush.msra.mxu0 %v293
        %362 = vmatpush.msra.mxu0 %v292
        %363 = vmatmul.f32.gmra.mxu0 %v265
        %v364 = vpop.f32.mrf.mxu0
        %v365 = vadd.f32 %v330, %v364
        %366 = vmatmul.f32.gmra.mxu0 %v267
        %v367 = vpop.f32.mrf.mxu0
        %v368 = vadd.f32 %v333, %v367
        %369 = vmatmul.f32.gmra.mxu0 %v269
        %v370 = vpop.f32.mrf.mxu0
        %v371 = vadd.f32 %v336, %v370
        %372 = vmatmul.f32.gmra.mxu0 %v271
        %v373 = vpop.f32.mrf.mxu0
        %v374 = vadd.f32 %v339, %v373
        %375 = vmatmul.f32.gmra.mxu0 %v273
        %v376 = vpop.f32.mrf.mxu0
        %v377 = vadd.f32 %v342, %v376
        %378 = vmatmul.f32.gmra.mxu0 %v275
        %v379 = vpop.f32.mrf.mxu0
        %v380 = vadd.f32 %v345, %v379
        %381 = vdwg.mxu0
        %382 = vst [vmem:[%s261] sm:$0xff] %v365
        %383 = vst [vmem:[%s261 + $0x8] sm:$0xff] %v368
        %384 = vst [vmem:[%s261 + $0x10] sm:$0xff] %v371
        %385 = vst [vmem:[%s261 + $0x18] sm:$0xff] %v374
        %386 = vst [vmem:[%s261 + $0x20] sm:$0xff] %v377
        %387 = vst [vmem:[%s261 + $0x28] sm:$0xff] %v380
        %s388 = sand.u32 %s121, 1
        %s389 = scalar_lea.sflag [#allocation4], %s388
        %s390 = sand.u32 %s121, 1
        %s391 = smul.addr %s390, 48
        %s392 = scalar_lea.vmem [#allocation8], %s391
        // Predicated region
        $region45: #{tpu_custom_call.1} parent=31 // pred_check
          %p393 = pneg %p131
        $region46: #{tpu_custom_call.1} parent=31 // pred_check_branch
          %395 = sbr.rel (%p393) target = $region48
        $region47: #{tpu_custom_call.1} parent=31 // pred_region
          %s396 = smul.u32 6, %s25
          %398 = vsyncadd %s389, 0
          %s399 = smul.addr %s396, 2
          %s400 = sadd.s32 %s26, %s399
          %s401 = smul.addr %s400, 8
          %s402 = scalar_lea.hbm %s3, %s401
          %s403 = sshll.u32 %s392, 4
          %s404 = int_to_ptr.vmem [resolvable:$true] %s403
          %s405 = sshll.u32 %s402, 4
          %s406 = int_to_ptr.hbm [resolvable:$true] %s405
          %411 = dma.vmem_to_hbm [thread:$0]  %s404, 768, %s406, %s389, 128, 256, 8
        $region48: #{tpu_custom_call.1} parent=31 // pred_fallthru
          _
      $region32: #{tpu_custom_call.1} parent=5 // pred_fallthru
        _
      %p412 = scmp.le.s32.totalorder 2, %s16
      // Predicated region
      $region49: #{tpu_custom_call.1} parent=5 // pred_check
        %p413 = pneg %p412
      $region50: #{tpu_custom_call.1} parent=5 // pred_check_branch
        %415 = sbr.rel (%p413) target = $region52
      $region51: #{tpu_custom_call.1} parent=5 // pred_region
        %s416 = ssub.s32 %s16, 2
        // Predicated region
        $region53: #{tpu_custom_call.1} parent=51 // pred_check
          %p417 = pneg %p137
        $region54: #{tpu_custom_call.1} parent=51 // pred_check_branch
          %419 = sbr.rel (%p417) target = $region56
        $region55: #{tpu_custom_call.1} parent=51 // pred_region
          %s420 = sand.u32 %s122, 1
          %s421 = scalar_lea.sflag [#allocation4], %s420
          %s422 = sand.u32 %s122, 1
          %s423 = smul.addr %s422, 48
          %s424 = scalar_lea.vmem [#allocation8], %s423
          %426 = dma.done %s421, 768
        $region56: #{tpu_custom_call.1} parent=51 // pred_fallthru
          _
      $region52: #{tpu_custom_call.1} parent=5 // pred_fallthru
        _
    $region6: #{tpu_custom_call.1} parent=1 // loop_footer
      %s20 = sadd.s32 1, %s16
    $region7: #{tpu_custom_call.1} parent=1 // loop_footer_branch
      %15 = sbr.rel target = $region3
    $region8: #{tpu_custom_call.1} parent=1 // loop_exit
      _
    %427 = vsyncpa [#allocation3], 1
    %s428 = scalar_lea.sflag [#allocation3], 1
    %429 = vsyncpa %s428, 1
    %430 = vsyncpa [#allocation6], 1
    %s431 = scalar_lea.sflag [#allocation6], 1
    %432 = vsyncpa %s431, 1
    %433 = vsyncpa [#allocation4], 1
    %s434 = scalar_lea.sflag [#allocation4], 1
    %435 = vsyncpa %s434, 1

</llo_original>
